<compile_context>
chip_gen: v6e
topology: v6e:2x2x1
jax: 0.10.0
libtpu: 0.0.40
codegen_flags: <defaults>
</compile_context>

<pallas_src>
import math

import numpy as np

import jax
import jax.numpy as jnp
from jax.experimental import pallas as pl
from jax.experimental.pallas import tpu as pltpu


def _make_sparse_conv_kernel(H, W, K, Cin, Cout, B):
    HW = H * W
    KK = K * K
    pad = (K - 1) // 2

    # Static lane shift per tap: output flat position p reads feature flat
    # position p + (kh - pad) * W + (kw - pad); the rolled-in halo elements
    # are zeroed by the precomputed boundary mask.
    shifts = []
    for kh in range(K):
        for kw in range(K):
            d = (kh - pad) * W + (kw - pad)
            shifts.append((-d) % HW)

    def kernel(flags_ref, fetch_ref, x_ref, w_ref, b_ref, tmask_ref, o_ref,
               col_ref):
        # flags_ref : (G,) int32 SMEM  -- per-block "any mask nonzero"
        # fetch_ref : (G,) int32 SMEM  -- DMA-eliding fetch index (consumed by
        #                                 the feature index_map, not here)
        # x_ref     : (B, Cin+1, HW)   -- native NCHW images, lane-dense HW,
        #                                 last channel is the sparsity mask
        # w_ref     : (Cout, K*K*Cin)  -- weights, tap-major rows
        # b_ref     : (Cout, 1) f32    -- bias
        # tmask_ref : (K*K, HW)        -- per-tap boundary masks
        # o_ref     : (B, Cout, HW)    -- output, lane-dense on HW
        # col_ref   : VMEM (K*K*Cin, B*HW) lane-dense im2col slab
        g = pl.program_id(0)

        @pl.when(flags_ref[g] != 0)
        def _compute():
            # Lane-dense im2col: one full-lane-width (Cin, HW) store per
            # (image, tap).  pltpu.roll runs on the XLU (free slot), the
            # boundary multiply on the VPU.
            for b in range(B):
                feat = x_ref[b, 0:Cin, :]                      # (Cin, HW)
                for t in range(KK):
                    if shifts[t] == 0:
                        shifted = feat
                    else:
                        shifted = pltpu.roll(feat, shift=shifts[t], axis=1)
                    tap = shifted * tmask_ref[t:t + 1, :]      # zero the halo
                    col_ref[t * Cin:(t + 1) * Cin,
                            b * HW:(b + 1) * HW] = tap.astype(col_ref.dtype)

            # Single MXU contraction in standard (M,K)x(K,N) orientation,
            # f32 accumulation; result stays in vregs through the epilogue.
            acc = jax.lax.dot_general(
                w_ref[...], col_ref[...],
                dimension_numbers=(((1,), (0,)), ((), ())),
                preferred_element_type=jnp.float32)            # (Cout, B*HW)

            bias = b_ref[...]                                   # (Cout, 1)
            for b in range(B):
                m = x_ref[b, Cin:Cin + 1, :].astype(jnp.float32)   # (1, HW)
                y = (acc[:, b * HW:(b + 1) * HW] + bias) * m
                o_ref[b] = y.astype(o_ref.dtype)

        @pl.when(flags_ref[g] == 0)
        def _skip():
            # Mask is identically zero for every image in this block.
            # NOTE(semantics): writes exact zeros; if conv(x) produced Inf/NaN
            # the PyTorch reference (conv(x) * 0) would propagate NaN instead.
            o_ref[...] = jnp.zeros_like(o_ref)

    return kernel


def sparse_conv2d(x_nchw, weight_oihw, bias, *, stride=1, padding=1,
                  dilation=1, groups=1, compute_dtype=None,
                  images_per_block=None):
    """Pallas TPU implementation of SparseConv2d.forward.

    x_nchw      : (N, Cin+1, H, W)  -- last channel is the sparsity mask.
    weight_oihw : (Cout, Cin, K, K)
    bias        : (Cout,)
    compute_dtype: MXU-operand dtype (default: input dtype => exact module
                   numerics). jnp.bfloat16 is the recommended fast path on
                   v6e/v7x; the activations are never re-materialized in HBM,
                   the cast happens in-kernel and accumulation is always f32.
    images_per_block: images per grid step (default: auto, largest divisor of
                   N that fits the VMEM budget).
    """
    assert stride == 1 and dilation == 1 and groups == 1, (
        "mask broadcast in SparseConv2d requires spatial-preserving conv")
    N, C_plus_1, H, W = x_nchw.shape
    Cout, Cin, K, K2 = weight_oihw.shape
    assert K == K2 and C_plus_1 == Cin + 1
    assert 2 * padding == K - 1, "need 'same' padding for the mask multiply"

    if compute_dtype is None:
        compute_dtype = x_nchw.dtype
    HW = H * W
    KK = K * K
    KKC = KK * Cin
    in_bytes = jnp.dtype(x_nchw.dtype).itemsize
    cd_bytes = jnp.dtype(compute_dtype).itemsize

    # ---- choose how many images each grid step owns ------------------------
    if images_per_block is None:
        # TODO(synk): for production resolutions add a second grid axis over
        # row slabs (with halo rows, lane-padded to a multiple of 128) so
        # col_ref stays <= ~8-12 MiB on v7x's 64 MiB VMEM; whole images per
        # step are fine at WaveletVFI-decoder tile sizes.
        budget = 20 * 1024 * 1024
        images_per_block = 1
        for cand in range(1, N + 1):
            if N % cand:
                continue
            if cand * HW > 2048:          # keep the matmul result vreg-resident
                break
            need = (2 * cand * (Cin + 1) * HW * in_bytes    # dbl-buffered input
                    + 2 * cand * Cout * HW * in_bytes       # dbl-buffered output
                    + KKC * cand * HW * cd_bytes)           # im2col scratch
            if need <= budget:
                images_per_block = cand
    B = images_per_block
    assert N % B == 0, "images_per_block must divide the batch"
    G = N // B

    # ---- wrapper-side glue: layout only, no HBM copy of the activations ----
    # (N, C+1, H, W) -> (N, C+1, H*W) is a contiguous reshape (free).
    x_flat = x_nchw.reshape(N, Cin + 1, HW)

    # Per-block sparsity flag + DMA-eliding fetch index: a masked-out block's
    # feature index_map repeats the previous fetched block index, so Pallas
    # skips the HBM->VMEM copy (the skip branch never reads x_ref).
    img_any = jnp.any(x_nchw[:, -1, :, :] != 0, axis=(1, 2))        # (N,)
    blk_any = jnp.any(img_any.reshape(G, B), axis=1)                # (G,)
    flags = blk_any.astype(jnp.int32)
    gidx = jnp.arange(G, dtype=jnp.int32)
    fetch_idx = jnp.maximum(
        jax.lax.cummax(jnp.where(blk_any, gidx, -1), axis=0), 0
    ).astype(jnp.int32)

    # Weights -> (Cout, K*K*Cin) tap-major rows matching the im2col layout.
    w2 = jnp.transpose(weight_oihw, (0, 2, 3, 1)).reshape(Cout, KKC)
    w2 = w2.astype(compute_dtype)
    b2 = bias.reshape(Cout, 1).astype(jnp.float32)

    # Precomputed per-tap boundary masks (zero the rolled-in halo elements).
    pad_off = (K - 1) // 2
    tm = np.zeros((KK, HW), dtype=np.float32)
    for kh in range(K):
        for kw in range(K):
            dh, dw = kh - pad_off, kw - pad_off
            m2 = np.zeros((H, W), dtype=np.float32)
            m2[max(0, -dh):min(H, H - dh), max(0, -dw):min(W, W - dw)] = 1.0
            tm[kh * K + kw] = m2.reshape(HW)
    tap_mask = jnp.asarray(tm, dtype=x_nchw.dtype)

    kernel = _make_sparse_conv_kernel(H, W, K, Cin, Cout, B)

    # VMEM budget derived from the actual block sizes (not hard-coded).
    blk_bytes = (2 * B * (Cin + 1) * HW * in_bytes
                 + 2 * B * Cout * HW * in_bytes
                 + KKC * B * HW * cd_bytes
                 + 2 * (Cout * KKC * cd_bytes + Cout * 4 + KK * HW * in_bytes))
    vmem_limit = int(min(64 * 1024 * 1024, max(8 * 1024 * 1024, 2 * blk_bytes)))

    # NOTE: output is written in the input dtype (f32 in WaveletVFI); if a
    # bf16 output were required, stacking >=16 output channels per block
    # would avoid half-filled (16,128) bf16 tiles.
    out = pl.pallas_call(
        kernel,
        out_shape=jax.ShapeDtypeStruct((N, Cout, HW), x_nchw.dtype),
        grid_spec=pltpu.PrefetchScalarGridSpec(
            num_scalar_prefetch=2,                    # flags + fetch indices
            grid=(G,),
            in_specs=[
                pl.BlockSpec((B, Cin + 1, HW),
                             lambda g, flags, fetch: (fetch[g], 0, 0)),
                pl.BlockSpec((Cout, KKC), lambda g, flags, fetch: (0, 0)),
                pl.BlockSpec((Cout, 1), lambda g, flags, fetch: (0, 0)),
                pl.BlockSpec((KK, HW), lambda g, flags, fetch: (0, 0)),
            ],
            out_specs=pl.BlockSpec((B, Cout, HW),
                                   lambda g, flags, fetch: (g, 0, 0)),
            scratch_shapes=[pltpu.VMEM((KKC, B * HW), compute_dtype)],
        ),
        compiler_params=pltpu.CompilerParams(
            dimension_semantics=("parallel",),
            vmem_limit_bytes=vmem_limit),
    )(flags, fetch_idx, x_flat, w2, b2, tap_mask)

    # (N, Cout, H*W) is already NCHW-contiguous; the reshape is free.
    return out.reshape(N, Cout, H, W)


def _init_params(key, in_channels, out_channels, kernel_size):
    """Deterministic init matching nn.init.kaiming_uniform_(a=sqrt(5))."""
    kw_key, kb_key = jax.random.split(key)
    fan_in = in_channels * kernel_size * kernel_size
    w_bound = math.sqrt(6.0 / (6.0 * fan_in))
    weight = jax.random.uniform(
        kw_key, (out_channels, in_channels, kernel_size, kernel_size),
        minval=-w_bound, maxval=w_bound, dtype=jnp.float32)
    b_bound = 1.0 / math.sqrt(fan_in)
    bias = jax.random.uniform(
        kb_key, (out_channels,), minval=-b_bound, maxval=b_bound,
        dtype=jnp.float32)
    return weight, bias


def _reference(x_nchw, weight_oihw, bias, padding, compute_dtype):
    """Pure-JAX reference (lax conv) on the same compute-dtype operands."""
    mask = x_nchw[:, -1:, :, :].astype(jnp.float32)
    feat = x_nchw[:, :-1, :, :].astype(compute_dtype)
    w = weight_oihw.astype(compute_dtype)
    y = jax.lax.conv_general_dilated(
        feat, w, window_strides=(1, 1),
        padding=((padding, padding), (padding, padding)),
        dimension_numbers=("NCHW", "OIHW", "NCHW"),
        preferred_element_type=jnp.float32)
    y = y + bias.reshape(1, -1, 1, 1).astype(jnp.float32)
    return (y * mask).astype(x_nchw.dtype)


if __name__ == "__main__":
    key = jax.random.PRNGKey(0)
    k_x, k_m, k_p = jax.random.split(key, 3)

    # Small shapes consistent with the module: in_channels=4 (+1 mask channel),
    # out_channels=8, kernel_size=3, stride=1, padding=1.
    N, Cin, Cout, H, W, K = 2, 4, 8, 16, 16, 3

    feat = jax.random.normal(k_x, (N, Cin, H, W), dtype=jnp.float32)
    mask = (jax.random.uniform(k_m, (N, 1, H, W)) > 0.5).astype(jnp.float32)
    x = jnp.concatenate([feat, mask], axis=1)            # (N, Cin+1, H, W)

    weight, bias = _init_params(k_p, Cin, Cout, K)

    # 1) f32 path (default): matches the PyTorch module numerics. With the
    #    auto block size both images go through a single grid step.
    y32 = jax.block_until_ready(
        sparse_conv2d(x, weight, bias, stride=1, padding=1))
    ref32 = _reference(x, weight, bias, 1, jnp.float32)
    assert y32.shape == (N, Cout, H, W)
    assert jnp.allclose(y32, ref32, atol=5e-4, rtol=5e-4)

    # 2) bf16 fast path (bf16 MXU operands cast in-kernel, f32 accumulation).
    y16 = jax.block_until_ready(
        sparse_conv2d(x, weight, bias, stride=1, padding=1,
                      compute_dtype=jnp.bfloat16))
    ref16 = _reference(x, weight, bias, 1, jnp.bfloat16)
    assert jnp.allclose(y16, ref16, atol=1e-2, rtol=1e-2)

    # 3) zero mask on image 1 with one image per grid step exercises the
    #    flag-gated skip branch and the DMA-eliding fetch index map.
    x_zero = x.at[1, -1].set(0.0)
    yz = jax.block_until_ready(
        sparse_conv2d(x_zero, weight, bias, stride=1, padding=1,
                      images_per_block=1))
    refz = _reference(x_zero, weight, bias, 1, jnp.float32)
    assert jnp.allclose(yz, refz, atol=5e-4, rtol=5e-4)
    assert jnp.all(yz[1] == 0.0)

    # 4) every mask zero exercises the block-level skip with the default
    #    (batched) block size.
    x_all0 = x.at[:, -1].set(0.0)
    ya = jax.block_until_ready(
        sparse_conv2d(x_all0, weight, bias, stride=1, padding=1))
    assert jnp.all(ya == 0.0)

    print("KERNEL_OK")
</pallas_src>

<mosaic_0001>
module attributes {stable_mosaic.version = 11 : i64} {
  func.func @kernel(%arg0: i32, %arg1: memref<1xi32, #tpu.memory_space<smem>>, %arg2: memref<1xi32, #tpu.memory_space<smem>>, %arg3: memref<2x5x256xf32, #tpu.memory_space<vmem>>, %arg4: memref<8x36xf32, #tpu.memory_space<vmem>>, %arg5: memref<8x1xf32, #tpu.memory_space<vmem>>, %arg6: memref<9x256xf32, #tpu.memory_space<vmem>>, %arg7: memref<2x8x256xf32, #tpu.memory_space<vmem>>, %arg8: memref<36x512xf32, #tpu.memory_space<vmem>>) attributes {dimension_semantics = [#tpu.dimension_semantics<parallel>], iteration_bounds = array<i64: 1>, scalar_prefetch = 2 : i64, scratch_operands = 1 : i64, tpu.core_type = #tpu.core_type<tc>, window_params = [{transform_indices = @transform_0, window_bounds = array<i64: 2, 5, 256>}, {pipeline_mode = #tpu.pipeline_mode<synchronous>, transform_indices = @transform_1, window_bounds = array<i64: 8, 36>}, {pipeline_mode = #tpu.pipeline_mode<synchronous>, transform_indices = @transform_2, window_bounds = array<i64: 8, 1>}, {pipeline_mode = #tpu.pipeline_mode<synchronous>, transform_indices = @transform_3, window_bounds = array<i64: 9, 256>}, {transform_indices = @transform_4, window_bounds = array<i64: 2, 8, 256>}]} {
    %0 = arith.index_cast %arg0 : i32 to index
    %1 = memref.load %arg1[%0] : memref<1xi32, #tpu.memory_space<smem>>
    %c0_i32 = arith.constant 0 : i32
    %2 = arith.cmpi ne, %1, %c0_i32 : i32
    %3 = arith.extui %2 : i1 to i32
    %c0_i32_0 = arith.constant 0 : i32
    %4 = arith.cmpi ne, %3, %c0_i32_0 : i32
    scf.if %4 {
      %c0 = arith.constant 0 : index
      %c0_3 = arith.constant 0 : index
      %c0_4 = arith.constant 0 : index
      %10 = vector.load %arg3[%c0, %c0_3, %c0_4] : memref<2x5x256xf32, #tpu.memory_space<vmem>>, vector<1x4x256xf32>
      %11 = vector.shape_cast %10 : vector<1x4x256xf32> to vector<4x256xf32>
      %c17_i32 = arith.constant 17 : i32
      %12 = tpu.dynamic_rotate %11 by %c17_i32 dim 1 : vector<4x256xf32>, i32 -> vector<4x256xf32>
      %c0_5 = arith.constant 0 : index
      %c0_6 = arith.constant 0 : index
      %13 = vector.load %arg6[%c0_5, %c0_6] : memref<9x256xf32, #tpu.memory_space<vmem>>, vector<1x256xf32>
      %14 = vector.broadcast %13 : vector<1x256xf32> to vector<4x256xf32>
      %15 = arith.mulf %12, %14 : vector<4x256xf32>
      %c0_7 = arith.constant 0 : index
      %c0_8 = arith.constant 0 : index
      %16 = vector.load %arg8[%c0_7, %c0_8] : memref<36x512xf32, #tpu.memory_space<vmem>>, vector<4x256xf32>
      tpu.vector_store %arg8[%c0_7, %c0_8], %15 {strides = array<i32>} : memref<36x512xf32, #tpu.memory_space<vmem>>, vector<4x256xf32>,
      %c16_i32 = arith.constant 16 : i32
      %17 = tpu.dynamic_rotate %11 by %c16_i32 dim 1 : vector<4x256xf32>, i32 -> vector<4x256xf32>
      %c1 = arith.constant 1 : index
      %c0_9 = arith.constant 0 : index
      %18 = vector.load %arg6[%c1, %c0_9] : memref<9x256xf32, #tpu.memory_space<vmem>>, vector<1x256xf32>
      %19 = vector.broadcast %18 : vector<1x256xf32> to vector<4x256xf32>
      %20 = arith.mulf %17, %19 : vector<4x256xf32>
      %c4 = arith.constant 4 : index
      %c0_10 = arith.constant 0 : index
      %21 = vector.load %arg8[%c4, %c0_10] : memref<36x512xf32, #tpu.memory_space<vmem>>, vector<4x256xf32>
      tpu.vector_store %arg8[%c4, %c0_10], %20 {strides = array<i32>} : memref<36x512xf32, #tpu.memory_space<vmem>>, vector<4x256xf32>,
      %c15_i32 = arith.constant 15 : i32
      %22 = tpu.dynamic_rotate %11 by %c15_i32 dim 1 : vector<4x256xf32>, i32 -> vector<4x256xf32>
      %c2 = arith.constant 2 : index
      %c0_11 = arith.constant 0 : index
      %23 = vector.load %arg6[%c2, %c0_11] : memref<9x256xf32, #tpu.memory_space<vmem>>, vector<1x256xf32>
      %24 = vector.broadcast %23 : vector<1x256xf32> to vector<4x256xf32>
      %25 = arith.mulf %22, %24 : vector<4x256xf32>
      %c8 = arith.constant 8 : index
      %c0_12 = arith.constant 0 : index
      %26 = vector.load %arg8[%c8, %c0_12] : memref<36x512xf32, #tpu.memory_space<vmem>>, vector<4x256xf32>
      tpu.vector_store %arg8[%c8, %c0_12], %25 {strides = array<i32>} : memref<36x512xf32, #tpu.memory_space<vmem>>, vector<4x256xf32>,
      %c1_i32 = arith.constant 1 : i32
      %27 = tpu.dynamic_rotate %11 by %c1_i32 dim 1 : vector<4x256xf32>, i32 -> vector<4x256xf32>
      %c3 = arith.constant 3 : index
      %c0_13 = arith.constant 0 : index
      %28 = vector.load %arg6[%c3, %c0_13] : memref<9x256xf32, #tpu.memory_space<vmem>>, vector<1x256xf32>
      %29 = vector.broadcast %28 : vector<1x256xf32> to vector<4x256xf32>
      %30 = arith.mulf %27, %29 : vector<4x256xf32>
      %c12 = arith.constant 12 : index
      %c0_14 = arith.constant 0 : index
      %31 = vector.load %arg8[%c12, %c0_14] : memref<36x512xf32, #tpu.memory_space<vmem>>, vector<4x256xf32>
      tpu.vector_store %arg8[%c12, %c0_14], %30 {strides = array<i32>} : memref<36x512xf32, #tpu.memory_space<vmem>>, vector<4x256xf32>,
      %c4_15 = arith.constant 4 : index
      %c0_16 = arith.constant 0 : index
      %32 = vector.load %arg6[%c4_15, %c0_16] : memref<9x256xf32, #tpu.memory_space<vmem>>, vector<1x256xf32>
      %33 = vector.broadcast %32 : vector<1x256xf32> to vector<4x256xf32>
      %34 = arith.mulf %11, %33 : vector<4x256xf32>
      %c16 = arith.constant 16 : index
      %c0_17 = arith.constant 0 : index
      %35 = vector.load %arg8[%c16, %c0_17] : memref<36x512xf32, #tpu.memory_space<vmem>>, vector<4x256xf32>
      tpu.vector_store %arg8[%c16, %c0_17], %34 {strides = array<i32>} : memref<36x512xf32, #tpu.memory_space<vmem>>, vector<4x256xf32>,
      %c255_i32 = arith.constant 255 : i32
      %36 = tpu.dynamic_rotate %11 by %c255_i32 dim 1 : vector<4x256xf32>, i32 -> vector<4x256xf32>
      %c5 = arith.constant 5 : index
      %c0_18 = arith.constant 0 : index
      %37 = vector.load %arg6[%c5, %c0_18] : memref<9x256xf32, #tpu.memory_space<vmem>>, vector<1x256xf32>
      %38 = vector.broadcast %37 : vector<1x256xf32> to vector<4x256xf32>
      %39 = arith.mulf %36, %38 : vector<4x256xf32>
      %c20 = arith.constant 20 : index
      %c0_19 = arith.constant 0 : index
      %40 = vector.load %arg8[%c20, %c0_19] : memref<36x512xf32, #tpu.memory_space<vmem>>, vector<4x256xf32>
      tpu.vector_store %arg8[%c20, %c0_19], %39 {strides = array<i32>} : memref<36x512xf32, #tpu.memory_space<vmem>>, vector<4x256xf32>,
      %c241_i32 = arith.constant 241 : i32
      %41 = tpu.dynamic_rotate %11 by %c241_i32 dim 1 : vector<4x256xf32>, i32 -> vector<4x256xf32>
      %c6 = arith.constant 6 : index
      %c0_20 = arith.constant 0 : index
      %42 = vector.load %arg6[%c6, %c0_20] : memref<9x256xf32, #tpu.memory_space<vmem>>, vector<1x256xf32>
      %43 = vector.broadcast %42 : vector<1x256xf32> to vector<4x256xf32>
      %44 = arith.mulf %41, %43 : vector<4x256xf32>
      %c24 = arith.constant 24 : index
      %c0_21 = arith.constant 0 : index
      %45 = vector.load %arg8[%c24, %c0_21] : memref<36x512xf32, #tpu.memory_space<vmem>>, vector<4x256xf32>
      tpu.vector_store %arg8[%c24, %c0_21], %44 {strides = array<i32>} : memref<36x512xf32, #tpu.memory_space<vmem>>, vector<4x256xf32>,
      %c240_i32 = arith.constant 240 : i32
      %46 = tpu.dynamic_rotate %11 by %c240_i32 dim 1 : vector<4x256xf32>, i32 -> vector<4x256xf32>
      %c7 = arith.constant 7 : index
      %c0_22 = arith.constant 0 : index
      %47 = vector.load %arg6[%c7, %c0_22] : memref<9x256xf32, #tpu.memory_space<vmem>>, vector<1x256xf32>
      %48 = vector.broadcast %47 : vector<1x256xf32> to vector<4x256xf32>
      %49 = arith.mulf %46, %48 : vector<4x256xf32>
      %c28 = arith.constant 28 : index
      %c0_23 = arith.constant 0 : index
      %50 = vector.load %arg8[%c28, %c0_23] : memref<36x512xf32, #tpu.memory_space<vmem>>, vector<4x256xf32>
      tpu.vector_store %arg8[%c28, %c0_23], %49 {strides = array<i32>} : memref<36x512xf32, #tpu.memory_space<vmem>>, vector<4x256xf32>,
      %c239_i32 = arith.constant 239 : i32
      %51 = tpu.dynamic_rotate %11 by %c239_i32 dim 1 : vector<4x256xf32>, i32 -> vector<4x256xf32>
      %c8_24 = arith.constant 8 : index
      %c0_25 = arith.constant 0 : index
      %52 = vector.load %arg6[%c8_24, %c0_25] : memref<9x256xf32, #tpu.memory_space<vmem>>, vector<1x256xf32>
      %53 = vector.broadcast %52 : vector<1x256xf32> to vector<4x256xf32>
      %54 = arith.mulf %51, %53 : vector<4x256xf32>
      %c32 = arith.constant 32 : index
      %c0_26 = arith.constant 0 : index
      %55 = vector.load %arg8[%c32, %c0_26] : memref<36x512xf32, #tpu.memory_space<vmem>>, vector<4x256xf32>
      tpu.vector_store %arg8[%c32, %c0_26], %54 {strides = array<i32>} : memref<36x512xf32, #tpu.memory_space<vmem>>, vector<4x256xf32>,
      %c1_27 = arith.constant 1 : index
      %c0_28 = arith.constant 0 : index
      %c0_29 = arith.constant 0 : index
      %56 = vector.load %arg3[%c1_27, %c0_28, %c0_29] : memref<2x5x256xf32, #tpu.memory_space<vmem>>, vector<1x4x256xf32>
      %57 = vector.shape_cast %56 : vector<1x4x256xf32> to vector<4x256xf32>
      %c17_i32_30 = arith.constant 17 : i32
      %58 = tpu.dynamic_rotate %57 by %c17_i32_30 dim 1 : vector<4x256xf32>, i32 -> vector<4x256xf32>
      %c0_31 = arith.constant 0 : index
      %c0_32 = arith.constant 0 : index
      %59 = vector.load %arg6[%c0_31, %c0_32] : memref<9x256xf32, #tpu.memory_space<vmem>>, vector<1x256xf32>
      %60 = vector.broadcast %59 : vector<1x256xf32> to vector<4x256xf32>
      %61 = arith.mulf %58, %60 : vector<4x256xf32>
      %c0_33 = arith.constant 0 : index
      %c256 = arith.constant 256 : index
      %62 = vector.load %arg8[%c0_33, %c256] : memref<36x512xf32, #tpu.memory_space<vmem>>, vector<4x256xf32>
      tpu.vector_store %arg8[%c0_33, %c256], %61 {strides = array<i32>} : memref<36x512xf32, #tpu.memory_space<vmem>>, vector<4x256xf32>,
      %c16_i32_34 = arith.constant 16 : i32
      %63 = tpu.dynamic_rotate %57 by %c16_i32_34 dim 1 : vector<4x256xf32>, i32 -> vector<4x256xf32>
      %c1_35 = arith.constant 1 : index
      %c0_36 = arith.constant 0 : index
      %64 = vector.load %arg6[%c1_35, %c0_36] : memref<9x256xf32, #tpu.memory_space<vmem>>, vector<1x256xf32>
      %65 = vector.broadcast %64 : vector<1x256xf32> to vector<4x256xf32>
      %66 = arith.mulf %63, %65 : vector<4x256xf32>
      %c4_37 = arith.constant 4 : index
      %c256_38 = arith.constant 256 : index
      %67 = vector.load %arg8[%c4_37, %c256_38] : memref<36x512xf32, #tpu.memory_space<vmem>>, vector<4x256xf32>
      tpu.vector_store %arg8[%c4_37, %c256_38], %66 {strides = array<i32>} : memref<36x512xf32, #tpu.memory_space<vmem>>, vector<4x256xf32>,
      %c15_i32_39 = arith.constant 15 : i32
      %68 = tpu.dynamic_rotate %57 by %c15_i32_39 dim 1 : vector<4x256xf32>, i32 -> vector<4x256xf32>
      %c2_40 = arith.constant 2 : index
      %c0_41 = arith.constant 0 : index
      %69 = vector.load %arg6[%c2_40, %c0_41] : memref<9x256xf32, #tpu.memory_space<vmem>>, vector<1x256xf32>
      %70 = vector.broadcast %69 : vector<1x256xf32> to vector<4x256xf32>
      %71 = arith.mulf %68, %70 : vector<4x256xf32>
      %c8_42 = arith.constant 8 : index
      %c256_43 = arith.constant 256 : index
      %72 = vector.load %arg8[%c8_42, %c256_43] : memref<36x512xf32, #tpu.memory_space<vmem>>, vector<4x256xf32>
      tpu.vector_store %arg8[%c8_42, %c256_43], %71 {strides = array<i32>} : memref<36x512xf32, #tpu.memory_space<vmem>>, vector<4x256xf32>,
      %c1_i32_44 = arith.constant 1 : i32
      %73 = tpu.dynamic_rotate %57 by %c1_i32_44 dim 1 : vector<4x256xf32>, i32 -> vector<4x256xf32>
      %c3_45 = arith.constant 3 : index
      %c0_46 = arith.constant 0 : index
      %74 = vector.load %arg6[%c3_45, %c0_46] : memref<9x256xf32, #tpu.memory_space<vmem>>, vector<1x256xf32>
      %75 = vector.broadcast %74 : vector<1x256xf32> to vector<4x256xf32>
      %76 = arith.mulf %73, %75 : vector<4x256xf32>
      %c12_47 = arith.constant 12 : index
      %c256_48 = arith.constant 256 : index
      %77 = vector.load %arg8[%c12_47, %c256_48] : memref<36x512xf32, #tpu.memory_space<vmem>>, vector<4x256xf32>
      tpu.vector_store %arg8[%c12_47, %c256_48], %76 {strides = array<i32>} : memref<36x512xf32, #tpu.memory_space<vmem>>, vector<4x256xf32>,
      %c4_49 = arith.constant 4 : index
      %c0_50 = arith.constant 0 : index
      %78 = vector.load %arg6[%c4_49, %c0_50] : memref<9x256xf32, #tpu.memory_space<vmem>>, vector<1x256xf32>
      %79 = vector.broadcast %78 : vector<1x256xf32> to vector<4x256xf32>
      %80 = arith.mulf %57, %79 : vector<4x256xf32>
      %c16_51 = arith.constant 16 : index
      %c256_52 = arith.constant 256 : index
      %81 = vector.load %arg8[%c16_51, %c256_52] : memref<36x512xf32, #tpu.memory_space<vmem>>, vector<4x256xf32>
      tpu.vector_store %arg8[%c16_51, %c256_52], %80 {strides = array<i32>} : memref<36x512xf32, #tpu.memory_space<vmem>>, vector<4x256xf32>,
      %c255_i32_53 = arith.constant 255 : i32
      %82 = tpu.dynamic_rotate %57 by %c255_i32_53 dim 1 : vector<4x256xf32>, i32 -> vector<4x256xf32>
      %c5_54 = arith.constant 5 : index
      %c0_55 = arith.constant 0 : index
      %83 = vector.load %arg6[%c5_54, %c0_55] : memref<9x256xf32, #tpu.memory_space<vmem>>, vector<1x256xf32>
      %84 = vector.broadcast %83 : vector<1x256xf32> to vector<4x256xf32>
      %85 = arith.mulf %82, %84 : vector<4x256xf32>
      %c20_56 = arith.constant 20 : index
      %c256_57 = arith.constant 256 : index
      %86 = vector.load %arg8[%c20_56, %c256_57] : memref<36x512xf32, #tpu.memory_space<vmem>>, vector<4x256xf32>
      tpu.vector_store %arg8[%c20_56, %c256_57], %85 {strides = array<i32>} : memref<36x512xf32, #tpu.memory_space<vmem>>, vector<4x256xf32>,
      %c241_i32_58 = arith.constant 241 : i32
      %87 = tpu.dynamic_rotate %57 by %c241_i32_58 dim 1 : vector<4x256xf32>, i32 -> vector<4x256xf32>
      %c6_59 = arith.constant 6 : index
      %c0_60 = arith.constant 0 : index
      %88 = vector.load %arg6[%c6_59, %c0_60] : memref<9x256xf32, #tpu.memory_space<vmem>>, vector<1x256xf32>
      %89 = vector.broadcast %88 : vector<1x256xf32> to vector<4x256xf32>
      %90 = arith.mulf %87, %89 : vector<4x256xf32>
      %c24_61 = arith.constant 24 : index
      %c256_62 = arith.constant 256 : index
      %91 = vector.load %arg8[%c24_61, %c256_62] : memref<36x512xf32, #tpu.memory_space<vmem>>, vector<4x256xf32>
      tpu.vector_store %arg8[%c24_61, %c256_62], %90 {strides = array<i32>} : memref<36x512xf32, #tpu.memory_space<vmem>>, vector<4x256xf32>,
      %c240_i32_63 = arith.constant 240 : i32
      %92 = tpu.dynamic_rotate %57 by %c240_i32_63 dim 1 : vector<4x256xf32>, i32 -> vector<4x256xf32>
      %c7_64 = arith.constant 7 : index
      %c0_65 = arith.constant 0 : index
      %93 = vector.load %arg6[%c7_64, %c0_65] : memref<9x256xf32, #tpu.memory_space<vmem>>, vector<1x256xf32>
      %94 = vector.broadcast %93 : vector<1x256xf32> to vector<4x256xf32>
      %95 = arith.mulf %92, %94 : vector<4x256xf32>
      %c28_66 = arith.constant 28 : index
      %c256_67 = arith.constant 256 : index
      %96 = vector.load %arg8[%c28_66, %c256_67] : memref<36x512xf32, #tpu.memory_space<vmem>>, vector<4x256xf32>
      tpu.vector_store %arg8[%c28_66, %c256_67], %95 {strides = array<i32>} : memref<36x512xf32, #tpu.memory_space<vmem>>, vector<4x256xf32>,
      %c239_i32_68 = arith.constant 239 : i32
      %97 = tpu.dynamic_rotate %57 by %c239_i32_68 dim 1 : vector<4x256xf32>, i32 -> vector<4x256xf32>
      %c8_69 = arith.constant 8 : index
      %c0_70 = arith.constant 0 : index
      %98 = vector.load %arg6[%c8_69, %c0_70] : memref<9x256xf32, #tpu.memory_space<vmem>>, vector<1x256xf32>
      %99 = vector.broadcast %98 : vector<1x256xf32> to vector<4x256xf32>
      %100 = arith.mulf %97, %99 : vector<4x256xf32>
      %c32_71 = arith.constant 32 : index
      %c256_72 = arith.constant 256 : index
      %101 = vector.load %arg8[%c32_71, %c256_72] : memref<36x512xf32, #tpu.memory_space<vmem>>, vector<4x256xf32>
      tpu.vector_store %arg8[%c32_71, %c256_72], %100 {strides = array<i32>} : memref<36x512xf32, #tpu.memory_space<vmem>>, vector<4x256xf32>,
      %c0_73 = arith.constant 0 : index
      %c0_74 = arith.constant 0 : index
      %102 = vector.load %arg4[%c0_73, %c0_74] : memref<8x36xf32, #tpu.memory_space<vmem>>, vector<8x36xf32>
      %c0_75 = arith.constant 0 : index
      %c0_76 = arith.constant 0 : index
      %103 = vector.load %arg8[%c0_75, %c0_76] : memref<36x512xf32, #tpu.memory_space<vmem>>, vector<36x512xf32>
      %cst = arith.constant dense<0.000000e+00> : vector<8x512xf32>
      %104 = tpu.matmul %102, %103, %cst {dimension_numbers = #tpu.dot_dimension_numbers<[1], [0], [0], [1], [0, 0, 1, 1], [], []>} : vector<8x36xf32>, vector<36x512xf32>, vector<8x512xf32> -> vector<8x512xf32>
      %c0_77 = arith.constant 0 : index
      %c0_78 = arith.constant 0 : index
      %105 = vector.load %arg5[%c0_77, %c0_78] : memref<8x1xf32, #tpu.memory_space<vmem>>, vector<8x1xf32>
      %c0_79 = arith.constant 0 : index
      %c4_80 = arith.constant 4 : index
      %c0_81 = arith.constant 0 : index
      %106 = vector.load %arg3[%c0_79, %c4_80, %c0_81] : memref<2x5x256xf32, #tpu.memory_space<vmem>>, vector<1x1x256xf32>
      %107 = vector.shape_cast %106 : vector<1x1x256xf32> to vector<1x256xf32>
      %108 = vector.extract_strided_slice %104 {offsets = [0, 0], sizes = [8, 256], strides = [1, 1]} : vector<8x512xf32> to vector<8x256xf32>
      %109 = vector.broadcast %105 : vector<8x1xf32> to vector<8x256xf32>
      %110 = arith.addf %108, %109 : vector<8x256xf32>
      %111 = vector.broadcast %107 : vector<1x256xf32> to vector<8x256xf32>
      %112 = arith.mulf %110, %111 : vector<8x256xf32>
      %c0_82 = arith.constant 0 : index
      %c0_83 = arith.constant 0 : index
      %c0_84 = arith.constant 0 : index
      %113 = vector.load %arg7[%c0_82, %c0_83, %c0_84] : memref<2x8x256xf32, #tpu.memory_space<vmem>>, vector<1x8x256xf32>
      %114 = vector.shape_cast %113 : vector<1x8x256xf32> to vector<8x256xf32>
      %115 = vector.shape_cast %112 : vector<8x256xf32> to vector<1x8x256xf32>
      tpu.vector_store %arg7[%c0_82, %c0_83, %c0_84], %115 {strides = array<i32>} : memref<2x8x256xf32, #tpu.memory_space<vmem>>, vector<1x8x256xf32>,
      %c1_85 = arith.constant 1 : index
      %c4_86 = arith.constant 4 : index
      %c0_87 = arith.constant 0 : index
      %116 = vector.load %arg3[%c1_85, %c4_86, %c0_87] : memref<2x5x256xf32, #tpu.memory_space<vmem>>, vector<1x1x256xf32>
      %117 = vector.shape_cast %116 : vector<1x1x256xf32> to vector<1x256xf32>
      %118 = vector.extract_strided_slice %104 {offsets = [0, 256], sizes = [8, 256], strides = [1, 1]} : vector<8x512xf32> to vector<8x256xf32>
      %119 = vector.broadcast %105 : vector<8x1xf32> to vector<8x256xf32>
      %120 = arith.addf %118, %119 : vector<8x256xf32>
      %121 = vector.broadcast %117 : vector<1x256xf32> to vector<8x256xf32>
      %122 = arith.mulf %120, %121 : vector<8x256xf32>
      %c1_88 = arith.constant 1 : index
      %c0_89 = arith.constant 0 : index
      %c0_90 = arith.constant 0 : index
      %123 = vector.load %arg7[%c1_88, %c0_89, %c0_90] : memref<2x8x256xf32, #tpu.memory_space<vmem>>, vector<1x8x256xf32>
      %124 = vector.shape_cast %123 : vector<1x8x256xf32> to vector<8x256xf32>
      %125 = vector.shape_cast %122 : vector<8x256xf32> to vector<1x8x256xf32>
      tpu.vector_store %arg7[%c1_88, %c0_89, %c0_90], %125 {strides = array<i32>} : memref<2x8x256xf32, #tpu.memory_space<vmem>>, vector<1x8x256xf32>,
    } else {
    }
    %5 = arith.index_cast %arg0 : i32 to index
    %6 = memref.load %arg1[%5] : memref<1xi32, #tpu.memory_space<smem>>
    %c0_i32_1 = arith.constant 0 : i32
    %7 = arith.cmpi eq, %6, %c0_i32_1 : i32
    %8 = arith.extui %7 : i1 to i32
    %c0_i32_2 = arith.constant 0 : i32
    %9 = arith.cmpi ne, %8, %c0_i32_2 : i32
    scf.if %9 {
      %cst = arith.constant 0.000000e+00 : f32
      %10 = vector.broadcast %cst : f32 to vector<2x8x256xf32>
      %c0 = arith.constant 0 : index
      %c0_3 = arith.constant 0 : index
      %c0_4 = arith.constant 0 : index
      %11 = vector.load %arg7[%c0, %c0_3, %c0_4] : memref<2x8x256xf32, #tpu.memory_space<vmem>>, vector<2x8x256xf32>
      tpu.vector_store %arg7[%c0, %c0_3, %c0_4], %10 {strides = array<i32>} : memref<2x8x256xf32, #tpu.memory_space<vmem>>, vector<2x8x256xf32>,
    } else {
    }
    return
  }
  func.func @transform_0(%arg0: i32, %arg1: memref<1xi32, #tpu.memory_space<smem>>, %arg2: memref<1xi32, #tpu.memory_space<smem>>) -> (i32, i32, i32) {
    %0 = arith.index_cast %arg0 : i32 to index
    %1 = memref.load %arg2[%0] : memref<1xi32, #tpu.memory_space<smem>>
    %c0_i32 = arith.constant 0 : i32
    %c0_i32_0 = arith.constant 0 : i32
    %c0_i32_1 = arith.constant 0 : i32
    return %1, %c0_i32, %c0_i32_0 : i32, i32, i32
  }
  func.func @transform_1(%arg0: i32, %arg1: memref<1xi32, #tpu.memory_space<smem>>, %arg2: memref<1xi32, #tpu.memory_space<smem>>) -> (i32, i32) {
    %c0_i32 = arith.constant 0 : i32
    %c0_i32_0 = arith.constant 0 : i32
    %c0_i32_1 = arith.constant 0 : i32
    return %c0_i32, %c0_i32_0 : i32, i32
  }
  func.func @transform_2(%arg0: i32, %arg1: memref<1xi32, #tpu.memory_space<smem>>, %arg2: memref<1xi32, #tpu.memory_space<smem>>) -> (i32, i32) {
    %c0_i32 = arith.constant 0 : i32
    %c0_i32_0 = arith.constant 0 : i32
    %c0_i32_1 = arith.constant 0 : i32
    return %c0_i32, %c0_i32_0 : i32, i32
  }
  func.func @transform_3(%arg0: i32, %arg1: memref<1xi32, #tpu.memory_space<smem>>, %arg2: memref<1xi32, #tpu.memory_space<smem>>) -> (i32, i32) {
    %c0_i32 = arith.constant 0 : i32
    %c0_i32_0 = arith.constant 0 : i32
    %c0_i32_1 = arith.constant 0 : i32
    return %c0_i32, %c0_i32_0 : i32, i32
  }
  func.func @transform_4(%arg0: i32, %arg1: memref<1xi32, #tpu.memory_space<smem>>, %arg2: memref<1xi32, #tpu.memory_space<smem>>) -> (i32, i32, i32) {
    %c0_i32 = arith.constant 0 : i32
    %c0_i32_0 = arith.constant 0 : i32
    %c0_i32_1 = arith.constant 0 : i32
    return %arg0, %c0_i32, %c0_i32_0 : i32, i32, i32
  }
}

</mosaic_0001>

<llo_original>
// kernel: tpu_custom_call.1
$region0: #{tpu_custom_call.1}
  #allocation0 [shape = 'u32[]', space=smem, size = 0x4, offset = 0x4, fixed_abs, tag = 'smem constant byte address 0x4 - core index']
  #allocation1 [shape = 'u32[144,128]{1,0:T(1,128)}', space=vmem, size = 0x12000, scoped, tag = 'internal scratch']
  #allocation2 [shape = 'f32[36,512]{1,0:T(8,128)}', space=vmem, size = 0x14000, scoped, tag = 'scratch operand']
  #allocation3 [shape = 's32[1]{0}', space=sflag, size = 0x4, scoped, tag = 'scoped memory for tpu_custom_call.1']
  #allocation4 [shape = 's32[1]{0:T(128)S(6)}', space=smem, size = 0x200, scoped, tag = 'prefetched SMEM operand 0']
  #allocation5 [shape = 's32[1]{0:T(128)S(6)}', space=smem, size = 0x200, scoped, tag = 'prefetched SMEM operand 1']
  %s0 = inlined_call_operand.<no memory space> [shape: s32[1], index: 0, kind: input, shape index: {}]
  %s1 = inlined_call_operand.<no memory space> [shape: s32[1], index: 1, kind: input, shape index: {}]
  %s2 = inlined_call_operand.vmem [shape: f32[2,5,256], index: 2, kind: input, shape index: {}]
  %s3 = inlined_call_operand.vmem [shape: f32[8,36], index: 3, kind: input, shape index: {}]
  %s4 = inlined_call_operand.vmem [shape: f32[8,1], index: 4, kind: input, shape index: {}]
  %s5 = inlined_call_operand.vmem [shape: f32[9,256], index: 5, kind: input, shape index: {}]
  %s6 = inlined_call_operand.hbm [shape: f32[2,8,256], index: 6, kind: output, shape index: {}]
  %s7 = sld [smem:[#allocation0]]
  $region34: #{tpu_custom_call.1} parent=0
    _
  %s9 = ssub.s32 1, %s7
  %s10 = scalar_select 0, %s9, %s7
  %11 = sst [smem:[#allocation4]] %s0
  %12 = sst [smem:[#allocation5]] %s1
  $region1: #{tpu_custom_call.1} parent=0
    #allocation6 [shape = 'u8[16384]{0}', space=vmem, size = 0x4000, scoped, tag = 'output window, operand 0, single buffered']
    #allocation7 [shape = 's32[1]{0}', space=sflag, size = 0x4, scoped, tag = 'scoped memory for tpu_custom_call.1']
    %13 = vsyncpa [#allocation7], 0
    // Predicated region
    $region2: #{tpu_custom_call.1} parent=1 // pred_check
      _
    $region3: #{tpu_custom_call.1} parent=1 // pred_check_branch
      %15 = sbr.rel (0) target = $region5
    $region4: #{tpu_custom_call.1} parent=1 // pred_region
      %s16 = sld [smem:[#allocation5]]
      %s17 = smul.u32 2, %s16
      %p18 = scmp.lt.s32.totalorder %s17, 1
      %s19 = scalar_select %p18, %s17, 1
      %s20 = smul.addr %s19, 2
      %s21 = smul.addr %s20, 8
      %s22 = scalar_lea.vmem %s2, %s21
      %s23 = sld [smem:[#allocation5]]
      %s24 = smul.u32 2, %s23
    $region5: #{tpu_custom_call.1} parent=1 // pred_fallthru
      _
    // Predicated region
    $region6: #{tpu_custom_call.1} parent=1 // pred_check
      _
    $region7: #{tpu_custom_call.1} parent=1 // pred_check_branch
      %26 = sbr.rel (0) target = $region9
    $region8: #{tpu_custom_call.1} parent=1 // pred_region
      _
    $region9: #{tpu_custom_call.1} parent=1 // pred_fallthru
      _
    // Predicated region
    $region10: #{tpu_custom_call.1} parent=1 // pred_check
      _
    $region11: #{tpu_custom_call.1} parent=1 // pred_check_branch
      %28 = sbr.rel (0) target = $region13
    $region12: #{tpu_custom_call.1} parent=1 // pred_region
      _
    $region13: #{tpu_custom_call.1} parent=1 // pred_fallthru
      _
    // Predicated region
    $region14: #{tpu_custom_call.1} parent=1 // pred_check
      _
    $region15: #{tpu_custom_call.1} parent=1 // pred_check_branch
      %30 = sbr.rel (0) target = $region17
    $region16: #{tpu_custom_call.1} parent=1 // pred_region
      _
    $region17: #{tpu_custom_call.1} parent=1 // pred_fallthru
      _
    %s31 = sld [smem:[#allocation5]]
    %s32 = smul.u32 2, %s31
    %p33 = scmp.lt.s32.totalorder %s32, 1
    %s34 = scalar_select %p33, %s32, 1
    %s35 = smul.addr %s34, 2
    %s36 = smul.addr %s35, 8
    %s37 = scalar_lea.vmem %s2, %s36
    %s38 = sld [smem:[#allocation5]]
    %s39 = smul.u32 2, %s38
    %p40 = scmp.lt.s32.totalorder %s39, 1
    %s41 = scalar_select %p40, %s39, 1
    %s42 = smul.addr %s41, 2
    %s43 = smul.addr %s42, 8
    %s44 = scalar_lea.vmem %s2, %s43
    %s45 = sld [smem:[#allocation5]]
    %s46 = smul.u32 2, %s45
    %s47 = sld [smem:[#allocation4]]
    %p48 = scmp.ne.s32.totalorder %s47, 0
    // Predicated region
    $region18: #{tpu_custom_call.1} parent=1 // pred_check
      %p49 = pneg %p48
    $region19: #{tpu_custom_call.1} parent=1 // pred_check_branch
      %51 = sbr.rel (%p49) target = $region21
    $region20: #{tpu_custom_call.1} parent=1 // pred_region
      %v52 = vld [vmem:[%s44] sm:$0xf]
      %v53 = vld [vmem:[%s44 + $0x8] sm:$0xf]
      %54 = vrot.lane.b32.xlu0 %v52, 17
      %v55 = vpop.permute.xlu0 %54
      %56 = vrot.lane.b32.xlu0 %v53, 17
      %v57 = vpop.permute.xlu0 %56
      %v58 = vlaneseq
      %v59 = vand.u32 %v58, 127
      %vm60 = vcmp.lt.s32.totalorder %v59, 17
      %v61 = vsel %vm60, %v55, %v57
      %v62 = vsel %vm60, %v57, %v55
      %v63 = vld [vmem:[%s5] ss:$8 sm:$0x3]
      %v65 = vlaneseq
      %v66 = vshrl.u32 %v65, 7
      %v67 = vsub.s32 0, %v66
      %v68 = vrot.slane %v63, %v67
      %v69 = vlaneseq
      %v70 = vshrl.u32 %v69, 7
      %v71 = vsub.s32 1, %v70
      %v72 = vrot.slane %v63, %v71
      %v75 = vmul.f32 %v62, %v68
      %v76 = vmul.f32 %v61, %v72
      %77 = vst [vmem:[#allocation2] sm:$0xf] %v75
      %78 = vst [vmem:[#allocation2 + $0x8] sm:$0xf] %v76
      %79 = vrot.lane.b32.xlu0 %v52, 16
      %v80 = vpop.permute.xlu0 %79
      %81 = vrot.lane.b32.xlu0 %v53, 16
      %v82 = vpop.permute.xlu0 %81
      %vm83 = vcmp.lt.s32.totalorder %v59, 16
      %v84 = vsel %vm83, %v80, %v82
      %v85 = vsel %vm83, %v82, %v80
      %s86 = scalar_lea.vmem %s5, 1
      %v87 = vld [vmem:[%s86] ss:$8 sm:$0x3]
      %v89 = vlaneseq
      %v90 = vshrl.u32 %v89, 7
      %v91 = vsub.s32 0, %v90
      %v92 = vrot.slane %v87, %v91
      %v93 = vlaneseq
      %v94 = vshrl.u32 %v93, 7
      %v95 = vsub.s32 1, %v94
      %v96 = vrot.slane %v87, %v95
      %v99 = vmul.f32 %v85, %v92
      %v100 = vmul.f32 %v84, %v96
      %v103 = vrot.slane %v99, 4
      %v104 = vrot.slane %v100, 4
      %107 = vst [vmem:[#allocation2] sm:$0xf0] %v103
      %108 = vst [vmem:[#allocation2 + $0x8] sm:$0xf0] %v104
      %109 = vrot.lane.b32.xlu0 %v52, 15
      %v110 = vpop.permute.xlu0 %109
      %111 = vrot.lane.b32.xlu0 %v53, 15
      %v112 = vpop.permute.xlu0 %111
      %vm113 = vcmp.lt.s32.totalorder %v59, 15
      %v114 = vsel %vm113, %v110, %v112
      %v115 = vsel %vm113, %v112, %v110
      %s116 = scalar_lea.vmem %s5, 2
      %v117 = vld [vmem:[%s116] ss:$8 sm:$0x3]
      %v119 = vlaneseq
      %v120 = vshrl.u32 %v119, 7
      %v121 = vsub.s32 0, %v120
      %v122 = vrot.slane %v117, %v121
      %v123 = vlaneseq
      %v124 = vshrl.u32 %v123, 7
      %v125 = vsub.s32 1, %v124
      %v126 = vrot.slane %v117, %v125
      %v129 = vmul.f32 %v115, %v122
      %v130 = vmul.f32 %v114, %v126
      %131 = vst [vmem:[#allocation2 + $0x20] sm:$0xf] %v129
      %132 = vst [vmem:[#allocation2 + $0x28] sm:$0xf] %v130
      %133 = vrot.lane.b32.xlu0 %v52, 1
      %v134 = vpop.permute.xlu0 %133
      %135 = vrot.lane.b32.xlu0 %v53, 1
      %v136 = vpop.permute.xlu0 %135
      %vm137 = vcmp.lt.s32.totalorder %v59, 1
      %v138 = vsel %vm137, %v134, %v136
      %v139 = vsel %vm137, %v136, %v134
      %s140 = scalar_lea.vmem %s5, 3
      %v141 = vld [vmem:[%s140] ss:$8 sm:$0x3]
      %v143 = vlaneseq
      %v144 = vshrl.u32 %v143, 7
      %v145 = vsub.s32 0, %v144
      %v146 = vrot.slane %v141, %v145
      %v147 = vlaneseq
      %v148 = vshrl.u32 %v147, 7
      %v149 = vsub.s32 1, %v148
      %v150 = vrot.slane %v141, %v149
      %v153 = vmul.f32 %v139, %v146
      %v154 = vmul.f32 %v138, %v150
      %v157 = vrot.slane %v153, 4
      %v158 = vrot.slane %v154, 4
      %161 = vst [vmem:[#allocation2 + $0x20] sm:$0xf0] %v157
      %162 = vst [vmem:[#allocation2 + $0x28] sm:$0xf0] %v158
      %s163 = scalar_lea.vmem %s5, 4
      %v164 = vld [vmem:[%s163] ss:$8 sm:$0x3]
      %v166 = vlaneseq
      %v167 = vshrl.u32 %v166, 7
      %v168 = vsub.s32 0, %v167
      %v169 = vrot.slane %v164, %v168
      %v170 = vlaneseq
      %v171 = vshrl.u32 %v170, 7
      %v172 = vsub.s32 1, %v171
      %v173 = vrot.slane %v164, %v172
      %v176 = vmul.f32 %v52, %v169
      %v177 = vmul.f32 %v53, %v173
      %178 = vst [vmem:[#allocation2 + $0x40] sm:$0xf] %v176
      %179 = vst [vmem:[#allocation2 + $0x48] sm:$0xf] %v177
      %180 = vrot.lane.b32.xlu0 %v52, 127
      %v181 = vpop.permute.xlu0 %180
      %182 = vrot.lane.b32.xlu0 %v53, 127
      %v183 = vpop.permute.xlu0 %182
      %vm184 = vcmp.lt.s32.totalorder %v59, 127
      %v185 = vsel %vm184, %v181, %v183
      %v186 = vsel %vm184, %v183, %v181
      %s187 = scalar_lea.vmem %s5, 5
      %v188 = vld [vmem:[%s187] ss:$8 sm:$0x3]
      %v190 = vlaneseq
      %v191 = vshrl.u32 %v190, 7
      %v192 = vsub.s32 0, %v191
      %v193 = vrot.slane %v188, %v192
      %v194 = vlaneseq
      %v195 = vshrl.u32 %v194, 7
      %v196 = vsub.s32 1, %v195
      %v197 = vrot.slane %v188, %v196
      %v200 = vmul.f32 %v185, %v193
      %v201 = vmul.f32 %v186, %v197
      %v204 = vrot.slane %v200, 4
      %v205 = vrot.slane %v201, 4
      %208 = vst [vmem:[#allocation2 + $0x40] sm:$0xf0] %v204
      %209 = vst [vmem:[#allocation2 + $0x48] sm:$0xf0] %v205
      %210 = vrot.lane.b32.xlu0 %v52, 113
      %v211 = vpop.permute.xlu0 %210
      %212 = vrot.lane.b32.xlu0 %v53, 113
      %v213 = vpop.permute.xlu0 %212
      %vm214 = vcmp.lt.s32.totalorder %v59, 113
      %v215 = vsel %vm214, %v211, %v213
      %v216 = vsel %vm214, %v213, %v211
      %s217 = scalar_lea.vmem %s5, 6
      %v218 = vld [vmem:[%s217] ss:$8 sm:$0x3]
      %v220 = vlaneseq
      %v221 = vshrl.u32 %v220, 7
      %v222 = vsub.s32 0, %v221
      %v223 = vrot.slane %v218, %v222
      %v224 = vlaneseq
      %v225 = vshrl.u32 %v224, 7
      %v226 = vsub.s32 1, %v225
      %v227 = vrot.slane %v218, %v226
      %v230 = vmul.f32 %v215, %v223
      %v231 = vmul.f32 %v216, %v227
      %232 = vst [vmem:[#allocation2 + $0x60] sm:$0xf] %v230
      %233 = vst [vmem:[#allocation2 + $0x68] sm:$0xf] %v231
      %234 = vrot.lane.b32.xlu0 %v52, 112
      %v235 = vpop.permute.xlu0 %234
      %236 = vrot.lane.b32.xlu0 %v53, 112
      %v237 = vpop.permute.xlu0 %236
      %vm238 = vcmp.lt.s32.totalorder %v59, 112
      %v239 = vsel %vm238, %v235, %v237
      %v240 = vsel %vm238, %v237, %v235
      %s241 = scalar_lea.vmem %s5, 7
      %v242 = vld [vmem:[%s241] ss:$8 sm:$0x3]
      %v244 = vlaneseq
      %v245 = vshrl.u32 %v244, 7
      %v246 = vsub.s32 0, %v245
      %v247 = vrot.slane %v242, %v246
      %v248 = vlaneseq
      %v249 = vshrl.u32 %v248, 7
      %v250 = vsub.s32 1, %v249
      %v251 = vrot.slane %v242, %v250
      %v254 = vmul.f32 %v239, %v247
      %v255 = vmul.f32 %v240, %v251
      %v258 = vrot.slane %v254, 4
      %v259 = vrot.slane %v255, 4
      %262 = vst [vmem:[#allocation2 + $0x60] sm:$0xf0] %v258
      %263 = vst [vmem:[#allocation2 + $0x68] sm:$0xf0] %v259
      %264 = vrot.lane.b32.xlu0 %v52, 111
      %v265 = vpop.permute.xlu0 %264
      %266 = vrot.lane.b32.xlu0 %v53, 111
      %v267 = vpop.permute.xlu0 %266
      %vm268 = vcmp.lt.s32.totalorder %v59, 111
      %v269 = vsel %vm268, %v265, %v267
      %v270 = vsel %vm268, %v267, %v265
      %s271 = scalar_lea.vmem %s5, 16
      %v272 = vld [vmem:[%s271] ss:$8 sm:$0x3]
      %v274 = vlaneseq
      %v275 = vshrl.u32 %v274, 7
      %v276 = vsub.s32 0, %v275
      %v277 = vrot.slane %v272, %v276
      %v278 = vlaneseq
      %v279 = vshrl.u32 %v278, 7
      %v280 = vsub.s32 1, %v279
      %v281 = vrot.slane %v272, %v280
      %v284 = vmul.f32 %v269, %v277
      %v285 = vmul.f32 %v270, %v281
      %286 = vst [vmem:[#allocation2 + $0x80] sm:$0xf] %v284
      %287 = vst [vmem:[#allocation2 + $0x88] sm:$0xf] %v285
      %s288 = scalar_lea.vmem %s44, 16
      %v289 = vld [vmem:[%s288] sm:$0xf]
      %v290 = vld [vmem:[%s288 + $0x8] sm:$0xf]
      %291 = vrot.lane.b32.xlu0 %v289, 17
      %v292 = vpop.permute.xlu0 %291
      %293 = vrot.lane.b32.xlu0 %v290, 17
      %v294 = vpop.permute.xlu0 %293
      %v295 = vsel %vm60, %v292, %v294
      %v296 = vsel %vm60, %v294, %v292
      %v297 = vld [vmem:[%s5] ss:$8 sm:$0x3]
      %v299 = vlaneseq
      %v300 = vshrl.u32 %v299, 7
      %v301 = vsub.s32 0, %v300
      %v302 = vrot.slane %v297, %v301
      %v303 = vlaneseq
      %v304 = vshrl.u32 %v303, 7
      %v305 = vsub.s32 1, %v304
      %v306 = vrot.slane %v297, %v305
      %v309 = vmul.f32 %v296, %v302
      %v310 = vmul.f32 %v295, %v306
      %311 = vst [vmem:[#allocation2 + $0x10] sm:$0xf] %v309
      %312 = vst [vmem:[#allocation2 + $0x18] sm:$0xf] %v310
      %313 = vrot.lane.b32.xlu0 %v289, 16
      %v314 = vpop.permute.xlu0 %313
      %315 = vrot.lane.b32.xlu0 %v290, 16
      %v316 = vpop.permute.xlu0 %315
      %v317 = vsel %vm83, %v314, %v316
      %v318 = vsel %vm83, %v316, %v314
      %v319 = vld [vmem:[%s86] ss:$8 sm:$0x3]
      %v321 = vlaneseq
      %v322 = vshrl.u32 %v321, 7
      %v323 = vsub.s32 0, %v322
      %v324 = vrot.slane %v319, %v323
      %v325 = vlaneseq
      %v326 = vshrl.u32 %v325, 7
      %v327 = vsub.s32 1, %v326
      %v328 = vrot.slane %v319, %v327
      %v331 = vmul.f32 %v318, %v324
      %v332 = vmul.f32 %v317, %v328
      %v335 = vrot.slane %v331, 4
      %v336 = vrot.slane %v332, 4
      %339 = vst [vmem:[#allocation2 + $0x10] sm:$0xf0] %v335
      %340 = vst [vmem:[#allocation2 + $0x18] sm:$0xf0] %v336
      %341 = vrot.lane.b32.xlu0 %v289, 15
      %v342 = vpop.permute.xlu0 %341
      %343 = vrot.lane.b32.xlu0 %v290, 15
      %v344 = vpop.permute.xlu0 %343
      %v345 = vsel %vm113, %v342, %v344
      %v346 = vsel %vm113, %v344, %v342
      %v347 = vld [vmem:[%s116] ss:$8 sm:$0x3]
      %v349 = vlaneseq
      %v350 = vshrl.u32 %v349, 7
      %v351 = vsub.s32 0, %v350
      %v352 = vrot.slane %v347, %v351
      %v353 = vlaneseq
      %v354 = vshrl.u32 %v353, 7
      %v355 = vsub.s32 1, %v354
      %v356 = vrot.slane %v347, %v355
      %v359 = vmul.f32 %v346, %v352
      %v360 = vmul.f32 %v345, %v356
      %361 = vst [vmem:[#allocation2 + $0x30] sm:$0xf] %v359
      %362 = vst [vmem:[#allocation2 + $0x38] sm:$0xf] %v360
      %363 = vrot.lane.b32.xlu0 %v289, 1
      %v364 = vpop.permute.xlu0 %363
      %365 = vrot.lane.b32.xlu0 %v290, 1
      %v366 = vpop.permute.xlu0 %365
      %v367 = vsel %vm137, %v364, %v366
      %v368 = vsel %vm137, %v366, %v364
      %v369 = vld [vmem:[%s140] ss:$8 sm:$0x3]
      %v371 = vlaneseq
      %v372 = vshrl.u32 %v371, 7
      %v373 = vsub.s32 0, %v372
      %v374 = vrot.slane %v369, %v373
      %v375 = vlaneseq
      %v376 = vshrl.u32 %v375, 7
      %v377 = vsub.s32 1, %v376
      %v378 = vrot.slane %v369, %v377
      %v381 = vmul.f32 %v368, %v374
      %v382 = vmul.f32 %v367, %v378
      %v385 = vrot.slane %v381, 4
      %v386 = vrot.slane %v382, 4
      %389 = vst [vmem:[#allocation2 + $0x30] sm:$0xf0] %v385
      %390 = vst [vmem:[#allocation2 + $0x38] sm:$0xf0] %v386
      %v391 = vld [vmem:[%s163] ss:$8 sm:$0x3]
      %v393 = vlaneseq
      %v394 = vshrl.u32 %v393, 7
      %v395 = vsub.s32 0, %v394
      %v396 = vrot.slane %v391, %v395
      %v397 = vlaneseq
      %v398 = vshrl.u32 %v397, 7
      %v399 = vsub.s32 1, %v398
      %v400 = vrot.slane %v391, %v399
      %v403 = vmul.f32 %v289, %v396
      %v404 = vmul.f32 %v290, %v400
      %405 = vst [vmem:[#allocation2 + $0x50] sm:$0xf] %v403
      %406 = vst [vmem:[#allocation2 + $0x58] sm:$0xf] %v404
      %407 = vrot.lane.b32.xlu0 %v289, 127
      %v408 = vpop.permute.xlu0 %407
      %409 = vrot.lane.b32.xlu0 %v290, 127
      %v410 = vpop.permute.xlu0 %409
      %v411 = vsel %vm184, %v408, %v410
      %v412 = vsel %vm184, %v410, %v408
      %v413 = vld [vmem:[%s187] ss:$8 sm:$0x3]
      %v415 = vlaneseq
      %v416 = vshrl.u32 %v415, 7
      %v417 = vsub.s32 0, %v416
      %v418 = vrot.slane %v413, %v417
      %v419 = vlaneseq
      %v420 = vshrl.u32 %v419, 7
      %v421 = vsub.s32 1, %v420
      %v422 = vrot.slane %v413, %v421
      %v425 = vmul.f32 %v411, %v418
      %v426 = vmul.f32 %v412, %v422
      %v429 = vrot.slane %v425, 4
      %v430 = vrot.slane %v426, 4
      %433 = vst [vmem:[#allocation2 + $0x50] sm:$0xf0] %v429
      %434 = vst [vmem:[#allocation2 + $0x58] sm:$0xf0] %v430
      %435 = vrot.lane.b32.xlu0 %v289, 113
      %v436 = vpop.permute.xlu0 %435
      %437 = vrot.lane.b32.xlu0 %v290, 113
      %v438 = vpop.permute.xlu0 %437
      %v439 = vsel %vm214, %v436, %v438
      %v440 = vsel %vm214, %v438, %v436
      %v441 = vld [vmem:[%s217] ss:$8 sm:$0x3]
      %v443 = vlaneseq
      %v444 = vshrl.u32 %v443, 7
      %v445 = vsub.s32 0, %v444
      %v446 = vrot.slane %v441, %v445
      %v447 = vlaneseq
      %v448 = vshrl.u32 %v447, 7
      %v449 = vsub.s32 1, %v448
      %v450 = vrot.slane %v441, %v449
      %v453 = vmul.f32 %v439, %v446
      %v454 = vmul.f32 %v440, %v450
      %455 = vst [vmem:[#allocation2 + $0x70] sm:$0xf] %v453
      %456 = vst [vmem:[#allocation2 + $0x78] sm:$0xf] %v454
      %457 = vrot.lane.b32.xlu0 %v289, 112
      %v458 = vpop.permute.xlu0 %457
      %459 = vrot.lane.b32.xlu0 %v290, 112
      %v460 = vpop.permute.xlu0 %459
      %v461 = vsel %vm238, %v458, %v460
      %v462 = vsel %vm238, %v460, %v458
      %v463 = vld [vmem:[%s241] ss:$8 sm:$0x3]
      %v465 = vlaneseq
      %v466 = vshrl.u32 %v465, 7
      %v467 = vsub.s32 0, %v466
      %v468 = vrot.slane %v463, %v467
      %v469 = vlaneseq
      %v470 = vshrl.u32 %v469, 7
      %v471 = vsub.s32 1, %v470
      %v472 = vrot.slane %v463, %v471
      %v475 = vmul.f32 %v461, %v468
      %v476 = vmul.f32 %v462, %v472
      %v479 = vrot.slane %v475, 4
      %v480 = vrot.slane %v476, 4
      %483 = vst [vmem:[#allocation2 + $0x70] sm:$0xf0] %v479
      %484 = vst [vmem:[#allocation2 + $0x78] sm:$0xf0] %v480
      %485 = vrot.lane.b32.xlu0 %v289, 111
      %v486 = vpop.permute.xlu0 %485
      %487 = vrot.lane.b32.xlu0 %v290, 111
      %v488 = vpop.permute.xlu0 %487
      %v489 = vsel %vm268, %v486, %v488
      %v490 = vsel %vm268, %v488, %v486
      %v491 = vld [vmem:[%s271] ss:$8 sm:$0x3]
      %v493 = vlaneseq
      %v494 = vshrl.u32 %v493, 7
      %v495 = vsub.s32 0, %v494
      %v496 = vrot.slane %v491, %v495
      %v497 = vlaneseq
      %v498 = vshrl.u32 %v497, 7
      %v499 = vsub.s32 1, %v498
      %v500 = vrot.slane %v491, %v499
      %v503 = vmul.f32 %v489, %v496
      %v504 = vmul.f32 %v490, %v500
      %505 = vst [vmem:[#allocation2 + $0x90] sm:$0xf] %v503
      %506 = vst [vmem:[#allocation2 + $0x98] sm:$0xf] %v504
      %v507 = vld [vmem:[%s3] sm:$0xff]
      %v508 = vld [vmem:[#allocation2] sm:$0xff]
      %v509 = vld [vmem:[#allocation2 + $0x8] sm:$0xff]
      %v510 = vld [vmem:[#allocation2 + $0x10] sm:$0xff]
      %v511 = vld [vmem:[#allocation2 + $0x18] sm:$0xff]
      %v512 = vld [vmem:[#allocation2 + $0x20] sm:$0xff]
      %v513 = vld [vmem:[#allocation2 + $0x28] sm:$0xff]
      %v514 = vld [vmem:[#allocation2 + $0x30] sm:$0xff]
      %v515 = vld [vmem:[#allocation2 + $0x38] sm:$0xff]
      %v516 = vld [vmem:[#allocation2 + $0x40] sm:$0xff]
      %v517 = vld [vmem:[#allocation2 + $0x48] sm:$0xff]
      %v518 = vld [vmem:[#allocation2 + $0x50] sm:$0xff]
      %v519 = vld [vmem:[#allocation2 + $0x58] sm:$0xff]
      %v520 = vld [vmem:[#allocation2 + $0x60] sm:$0xff]
      %v521 = vld [vmem:[#allocation2 + $0x68] sm:$0xff]
      %v522 = vld [vmem:[#allocation2 + $0x70] sm:$0xff]
      %v523 = vld [vmem:[#allocation2 + $0x78] sm:$0xff]
      %v524 = vld [vmem:[#allocation2 + $0x80] sm:$0xf]
      %v525 = vld [vmem:[#allocation2 + $0x88] sm:$0xf]
      %v526 = vld [vmem:[#allocation2 + $0x90] sm:$0xf]
      %v527 = vld [vmem:[#allocation2 + $0x98] sm:$0xf]
      %vm528 = vcmask 293888
      %v530 = vsel %vm528, %v507, 0
      %vm532 = vcmask 1043456
      %v534 = vsel %vm532, %v524, 0
      %v537 = vsel %vm532, %v525, 0
      %v540 = vsel %vm532, %v526, 0
      %v543 = vsel %vm532, %v527, 0
      %545 = vmatprep.subr.mxu0 0.0
      %546 = vmatpush1.msra.mxu0 0.0
      %547 = vmatprep.subr.mxu0 0.0
      %548 = vmatpush1.msra.mxu0 0.0
      %549 = vmatprep.subr.mxu0 0.0
      %550 = vmatpush1.msra.mxu0 0.0
      %551 = vmatprep.subr.mxu0 0.0
      %552 = vmatpush1.msra.mxu0 0.0
      %553 = vmatprep.subr.mxu0 0.0
      %554 = vmatpush1.msra.mxu0 0.0
      %555 = vmatprep.subr.mxu0 0.0
      %556 = vmatpush1.msra.mxu0 0.0
      %557 = vmatprep.subr.mxu0 0.0
      %558 = vmatpush1.msra.mxu0 0.0
      %559 = vmatprep.subr.mxu0 0.0
      %560 = vmatpush1.msra.mxu0 0.0
      %561 = vmatprep.subr.mxu0 0.0
      %562 = vmatpush1.msra.mxu0 0.0
      %563 = vmatprep.subr.mxu0 0.0
      %564 = vmatpush1.msra.mxu0 0.0
      %565 = vmatprep.subr.mxu0 0.0
      %566 = vmatpush1.msra.mxu0 0.0
      %567 = vmatprep.subr.mxu0 %v537
      %568 = vmatpush1.msra.mxu0 %v534
      %569 = vmatprep.subr.mxu0 %v521
      %570 = vmatpush1.msra.mxu0 %v520
      %571 = vmatprep.subr.mxu0 %v517
      %572 = vmatpush1.msra.mxu0 %v516
      %573 = vmatprep.subr.mxu0 %v513
      %574 = vmatpush1.msra.mxu0 %v512
      %575 = vmatprep.subr.mxu0 %v509
      %576 = vmatpush1.msra.mxu0 %v508
      %577 = vmatprep.subr.mxu0 0.0
      %578 = vmatpush2.msra.mxu0 0.0
      %579 = vmatprep.subr.mxu0 0.0
      %580 = vmatpush2.msra.mxu0 0.0
      %581 = vmatprep.subr.mxu0 0.0
      %582 = vmatpush2.msra.mxu0 0.0
      %583 = vmatprep.subr.mxu0 0.0
      %584 = vmatpush2.msra.mxu0 0.0
      %585 = vmatprep.subr.mxu0 0.0
      %586 = vmatpush2.msra.mxu0 0.0
      %587 = vmatprep.subr.mxu0 0.0
      %588 = vmatpush2.msra.mxu0 0.0
      %589 = vmatprep.subr.mxu0 0.0
      %590 = vmatpush2.msra.mxu0 0.0
      %591 = vmatprep.subr.mxu0 0.0
      %592 = vmatpush2.msra.mxu0 0.0
      %593 = vmatprep.subr.mxu0 0.0
      %594 = vmatpush2.msra.mxu0 0.0
      %595 = vmatprep.subr.mxu0 0.0
      %596 = vmatpush2.msra.mxu0 0.0
      %597 = vmatprep.subr.mxu0 0.0
      %598 = vmatpush2.msra.mxu0 0.0
      %599 = vmatprep.subr.mxu0 0.0
      %600 = vmatpush2.msra.mxu0 0.0
      %601 = vmatprep.subr.mxu0 0.0
      %602 = vmatpush2.msra.mxu0 0.0
      %603 = vmatprep.subr.mxu0 0.0
      %604 = vmatpush2.msra.mxu0 0.0
      %605 = vmatprep.subr.mxu0 0.0
      %606 = vmatpush2.msra.mxu0 0.0
      %607 = vmatprep.subr.mxu0 0.0
      %608 = vmatpush2.msra.mxu0 0.0
      %609 = vmatprep.mubr.f32.mxu0 0.0
      %610 = vmatmul.mubr.f32.gmra.mxu0 %v530
      %v611 = vpop.f32.mrf.mxu0
      %v612 = vadd.f32 0.0, %v611
      %v613 = vpop.f32.mrf.mxu0
      %v614 = vadd.f32 0.0, %v613
      %615 = vdwg.mxu0
      %616 = vmatprep.subr.mxu0 0.0
      %617 = vmatpush1.msra.mxu0 0.0
      %618 = vmatprep.subr.mxu0 0.0
      %619 = vmatpush1.msra.mxu0 0.0
      %620 = vmatprep.subr.mxu0 0.0
      %621 = vmatpush1.msra.mxu0 0.0
      %622 = vmatprep.subr.mxu0 0.0
      %623 = vmatpush1.msra.mxu0 0.0
      %624 = vmatprep.subr.mxu0 0.0
      %625 = vmatpush1.msra.mxu0 0.0
      %626 = vmatprep.subr.mxu0 0.0
      %627 = vmatpush1.msra.mxu0 0.0
      %628 = vmatprep.subr.mxu0 0.0
      %629 = vmatpush1.msra.mxu0 0.0
      %630 = vmatprep.subr.mxu0 0.0
      %631 = vmatpush1.msra.mxu0 0.0
      %632 = vmatprep.subr.mxu0 0.0
      %633 = vmatpush1.msra.mxu0 0.0
      %634 = vmatprep.subr.mxu0 0.0
      %635 = vmatpush1.msra.mxu0 0.0
      %636 = vmatprep.subr.mxu0 0.0
      %637 = vmatpush1.msra.mxu0 0.0
      %638 = vmatprep.subr.mxu0 %v543
      %639 = vmatpush1.msra.mxu0 %v540
      %640 = vmatprep.subr.mxu0 %v523
      %641 = vmatpush1.msra.mxu0 %v522
      %642 = vmatprep.subr.mxu0 %v519
      %643 = vmatpush1.msra.mxu0 %v518
      %644 = vmatprep.subr.mxu0 %v515
      %645 = vmatpush1.msra.mxu0 %v514
      %646 = vmatprep.subr.mxu0 %v511
      %647 = vmatpush1.msra.mxu0 %v510
      %648 = vmatprep.subr.mxu0 0.0
      %649 = vmatpush2.msra.mxu0 0.0
      %650 = vmatprep.subr.mxu0 0.0
      %651 = vmatpush2.msra.mxu0 0.0
      %652 = vmatprep.subr.mxu0 0.0
      %653 = vmatpush2.msra.mxu0 0.0
      %654 = vmatprep.subr.mxu0 0.0
      %655 = vmatpush2.msra.mxu0 0.0
      %656 = vmatprep.subr.mxu0 0.0
      %657 = vmatpush2.msra.mxu0 0.0
      %658 = vmatprep.subr.mxu0 0.0
      %659 = vmatpush2.msra.mxu0 0.0
      %660 = vmatprep.subr.mxu0 0.0
      %661 = vmatpush2.msra.mxu0 0.0
      %662 = vmatprep.subr.mxu0 0.0
      %663 = vmatpush2.msra.mxu0 0.0
      %664 = vmatprep.subr.mxu0 0.0
      %665 = vmatpush2.msra.mxu0 0.0
      %666 = vmatprep.subr.mxu0 0.0
      %667 = vmatpush2.msra.mxu0 0.0
      %668 = vmatprep.subr.mxu0 0.0
      %669 = vmatpush2.msra.mxu0 0.0
      %670 = vmatprep.subr.mxu0 0.0
      %671 = vmatpush2.msra.mxu0 0.0
      %672 = vmatprep.subr.mxu0 0.0
      %673 = vmatpush2.msra.mxu0 0.0
      %674 = vmatprep.subr.mxu0 0.0
      %675 = vmatpush2.msra.mxu0 0.0
      %676 = vmatprep.subr.mxu0 0.0
      %677 = vmatpush2.msra.mxu0 0.0
      %678 = vmatprep.subr.mxu0 0.0
      %679 = vmatpush2.msra.mxu0 0.0
      %680 = vmatprep.mubr.f32.mxu0 0.0
      %681 = vmatmul.mubr.f32.gmra.mxu0 %v530
      %v682 = vpop.f32.mrf.mxu0
      %v683 = vadd.f32 0.0, %v682
      %v684 = vpop.f32.mrf.mxu0
      %v685 = vadd.f32 0.0, %v684
      %686 = vdwg.mxu0
      %v687 = vld [vmem:[%s4] sm:$0xff]
      %s688 = scalar_lea.vmem %s44, 4
      %v689 = vld [vmem:[%s688] ss:$8 sm:$0x3]
      %691 = vset.pattern.permute.xlu0 0
      %692 = vperm.xlu0 %691, %v687
      %v693 = vpop.permute.xlu0 %692
      %v695 = vadd.f32 %v612, %v693
      %v696 = vadd.f32 %v614, %v693
      %v698 = vlaneseq
      %v699 = vshrl.u32 %v698, 7
      %v700 = vsub.s32 0, %v699
      %v701 = vrot.slane %v689, %v700
      %v702 = vlaneseq
      %v703 = vshrl.u32 %v702, 7
      %v704 = vsub.s32 1, %v703
      %v705 = vrot.slane %v689, %v704
      %v708 = vmul.f32 %v695, %v701
      %v709 = vmul.f32 %v696, %v705
      %710 = vst [vmem:[#allocation6] sm:$0xff] %v708
      %711 = vst [vmem:[#allocation6 + $0x8] sm:$0xff] %v709
      %s712 = scalar_lea.vmem %s288, 4
      %v713 = vld [vmem:[%s712] ss:$8 sm:$0x3]
      %v714 = vadd.f32 %v683, %v693
      %v715 = vadd.f32 %v685, %v693
      %v717 = vlaneseq
      %v718 = vshrl.u32 %v717, 7
      %v719 = vsub.s32 0, %v718
      %v720 = vrot.slane %v713, %v719
      %v721 = vlaneseq
      %v722 = vshrl.u32 %v721, 7
      %v723 = vsub.s32 1, %v722
      %v724 = vrot.slane %v713, %v723
      %v727 = vmul.f32 %v714, %v720
      %v728 = vmul.f32 %v715, %v724
      %s729 = scalar_lea.vmem [#allocation6], 16
      %730 = vst [vmem:[%s729] sm:$0xff] %v727
      %731 = vst [vmem:[%s729 + $0x8] sm:$0xff] %v728
    $region21: #{tpu_custom_call.1} parent=1 // pred_fallthru
      _
    %s732 = sld [smem:[#allocation4]]
    %p733 = scmp.eq.s32.totalorder %s732, 0
    // Predicated region
    $region22: #{tpu_custom_call.1} parent=1 // pred_check
      %p734 = pneg %p733
    $region23: #{tpu_custom_call.1} parent=1 // pred_check_branch
      %736 = sbr.rel (%p734) target = $region25
    $region24: #{tpu_custom_call.1} parent=1 // pred_region
      %737 = vst [vmem:[#allocation6] sm:$0xff] 0.0
      %738 = vst [vmem:[#allocation6 + $0x8] sm:$0xff] 0.0
      %739 = vst [vmem:[#allocation6 + $0x10] sm:$0xff] 0.0
      %740 = vst [vmem:[#allocation6 + $0x18] sm:$0xff] 0.0
    $region25: #{tpu_custom_call.1} parent=1 // pred_fallthru
      _
    // Predicated region
    $region26: #{tpu_custom_call.1} parent=1 // pred_check
      _
    $region27: #{tpu_custom_call.1} parent=1 // pred_check_branch
      %742 = sbr.rel (0) target = $region29
    $region28: #{tpu_custom_call.1} parent=1 // pred_region
      %s744 = ssub.s32 512, 512
      %745 = vsyncadd [#allocation7], %s744
      %s746 = sshll.u32 [#allocation6], 4
      %s747 = int_to_ptr.vmem [resolvable:$true] %s746
      %752 = dma.vmem_to_hbm [thread:$0]  %s747, 512, %s6, [#allocation7], 256, 256, 16
    $region29: #{tpu_custom_call.1} parent=1 // pred_fallthru
      _
    // Predicated region
    $region30: #{tpu_custom_call.1} parent=1 // pred_check
      _
    $region31: #{tpu_custom_call.1} parent=1 // pred_check_branch
      %754 = sbr.rel (0) target = $region33
    $region32: #{tpu_custom_call.1} parent=1 // pred_region
      %755 = dma.done [#allocation7], 512
    $region33: #{tpu_custom_call.1} parent=1 // pred_fallthru
      _
    %756 = vsyncpa [#allocation7], 1

</llo_original>
